<compile_context>
chip_gen: v6e
topology: v6e:2x2x1
jax: 0.10.0
libtpu: 0.0.40
codegen_flags: <defaults>
</compile_context>

<pallas_src>
import math
from functools import partial

import jax
import jax.numpy as jnp
from jax import lax
from jax.experimental import pallas as pl
from jax.experimental.pallas import tpu as pltpu

HIDDEN = 8     # self.hidden_dim
IMG_D = 125    # image feature dim
IMG_DP = 128   # lane-padded image feature dim (lanes 125/126/127 reused, see above)


# --------------------------------- kernel -----------------------------------

def _machine_kernel(x_ref, w_ref, out_ref, *, B, T, R, H):
    """Entire Machine forward in one invocation.

    x_ref  : (T*R, 128) packed time-major activations (R = rows per time block).
    w_ref  : (128 + 2H + R, 4H) packed parameters.
    out_ref: (B, 1)
    """
    # ---- unpack parameters with static, sublane-aligned slices (single DMA'd buffer) ----
    w_in = w_ref[0:IMG_DP, :]                              # (128, 4H)
    w_hh = w_ref[IMG_DP:IMG_DP + 2 * H, :]                 # (2H, 4H)
    w_tail = w_ref[IMG_DP + 2 * H:IMG_DP + 2 * H + R, :]   # (R, 4H)
    w_head = w_tail[:, 0:H]                                # (R, H) folded per-row head weights
    b_last = w_tail[0:B, H:H + 1]                          # (B, 1) folded output bias

    # ---- hoisted input projection: ONE MXU matmul covers x@W_ih + b_ih + b_hh for every
    # branch and every time step; result is (T*R, 4H) with 8-row-aligned per-time blocks.
    ig = jnp.dot(x_ref[...], w_in, preferred_element_type=jnp.float32)

    # mask for re-packing h into the lane-blocked (R, 2H) layout used by the fused
    # recurrent matmul: image rows -> lanes 0:H, moisture/temperature rows -> lanes H:2H.
    row = lax.broadcasted_iota(jnp.int32, (R, 2 * H), 0)
    col = lax.broadcasted_iota(jnp.int32, (R, 2 * H), 1)
    img_rows = row < B
    mt_rows = jnp.logical_and(row >= B, row < 3 * B)
    left = col < H
    mask16 = jnp.where(
        jnp.logical_or(jnp.logical_and(img_rows, left),
                       jnp.logical_and(mt_rows, jnp.logical_not(left))),
        1.0, 0.0).astype(jnp.float32)

    h16 = jnp.zeros((R, 2 * H), jnp.float32)
    c = jnp.zeros((R, H), jnp.float32)
    h = jnp.zeros((R, H), jnp.float32)

    # ---- recurrence: T tiny, statically unrolled; one small MXU matmul and one big tanh
    # per step; h/c live entirely in vregs. ----
    for t in range(T):
        gates = ig[t * R:(t + 1) * R, :] + jnp.dot(
            h16, w_hh, preferred_element_type=jnp.float32)         # (R, 4H)
        # i/f/o pre-activations were pre-scaled by 0.5 in the packed weights, so
        # sigmoid(z) = 0.5*(1 + tanh(z/2)) needs only this single tanh for all gates.
        tg = jnp.tanh(gates)
        i = 0.5 + 0.5 * tg[:, 0 * H:1 * H]
        f = 0.5 + 0.5 * tg[:, 1 * H:2 * H]
        g = tg[:, 2 * H:3 * H]
        o = 0.5 + 0.5 * tg[:, 3 * H:4 * H]
        c = f * c + i * g
        h = o * jnp.tanh(c)
        h16 = jnp.concatenate([h, h], axis=1) * mask16              # lane-blocked repack

    # ---- epilogue: branch FCs + last_fc already folded into per-row head weights ----
    s = jnp.sum(h * w_head, axis=1, keepdims=True)                  # (R, 1)
    out = s[0:B, :] + s[B:2 * B, :] + s[2 * B:3 * B, :] + b_last    # (B, 1)
    out_ref[...] = out.astype(out_ref.dtype)


# -------------------------------- wrapper ------------------------------------

def machine_forward_impl(packed_w, image, moisture, temperature):
    B, T, _ = image.shape
    H = HIDDEN
    R = ((3 * B + 7) // 8) * 8            # rows per time block (8-aligned)
    assert packed_w.shape == (IMG_DP + 2 * H + R, 4 * H)

    # Pack all three sequences into one time-major (T*R, 128) slab (fused by XLA under jit):
    #   rows  0:B   image features in lanes 0:125, lane 126 = 1 (image bias lane)
    #   rows  B:2B  moisture value in lane 125,    lane 127 = 1 (moisture bias lane)
    #   rows 2B:3B  temperature value in lane 125, lane 127 = 1 (shares moisture_lstm: orig bug)
    #   rows 3B:R   zero padding
    x = jnp.zeros((T, R, IMG_DP), jnp.float32)
    img_t = jnp.transpose(image, (1, 0, 2)).astype(jnp.float32)          # (T, B, 125)
    moi_t = jnp.transpose(moisture, (1, 0, 2))[..., 0].astype(jnp.float32)
    tmp_t = jnp.transpose(temperature, (1, 0, 2))[..., 0].astype(jnp.float32)
    x = x.at[:, 0:B, 0:IMG_D].set(img_t)
    x = x.at[:, 0:B, 126].set(1.0)
    x = x.at[:, B:2 * B, 125].set(moi_t)
    x = x.at[:, B:2 * B, 127].set(1.0)
    x = x.at[:, 2 * B:3 * B, 125].set(tmp_t)
    x = x.at[:, 2 * B:3 * B, 127].set(1.0)
    x = x.reshape(T * R, IMG_DP)

    kernel = partial(_machine_kernel, B=B, T=T, R=R, H=H)
    return pl.pallas_call(
        kernel,
        out_shape=jax.ShapeDtypeStruct((B, 1), jnp.float32),
        in_specs=[pl.BlockSpec(memory_space=pltpu.MemorySpace.VMEM),   # x        (T*R, 128)
                  pl.BlockSpec(memory_space=pltpu.MemorySpace.VMEM)],  # packed_w (152, 32)
        out_specs=pl.BlockSpec(memory_space=pltpu.MemorySpace.VMEM),
    )(x, packed_w)


machine_forward = jax.jit(machine_forward_impl)


# --------------------- one-time parameter packing (host) ---------------------

def pack_machine_params(params, batch_size):
    """Pack all module parameters into a single (128+2H+R, 4H) array. Done ONCE,
    outside the per-call hot path."""
    H = HIDDEN
    B = batch_size
    R = ((3 * B + 7) // 8) * 8

    wih_i, whh_i, b_i = params["image_lstm"]        # (125,4H), (H,4H), (1,4H)
    wih_m, whh_m, b_m = params["moisture_lstm"]     # (1,4H),   (H,4H), (1,4H)
    wfc_i, bfc_i = params["image_fc"]               # (H,1), (1,1)
    wfc_m, bfc_m = params["moisture_fc"]
    wfc_t, bfc_t = params["temperature_fc"]
    wl, bl = params["last_fc"]                      # (3,1), (1,1)

    # sigmoid(z) = 0.5*(1+tanh(z/2)): fold the 0.5 into the i/f/o gate columns so the
    # kernel needs a single tanh per step (exact identity).
    scale = jnp.concatenate([jnp.full((1, H), 0.5), jnp.full((1, H), 0.5),
                             jnp.ones((1, H)), jnp.full((1, H), 0.5)], axis=1)   # (1,4H)

    # combined input projection + biases-as-lanes
    w_in = jnp.zeros((IMG_DP, 4 * H), jnp.float32)
    w_in = w_in.at[0:IMG_D, :].set(wih_i)
    w_in = w_in.at[IMG_D, :].set(wih_m[0])     # lane 125 carries the moist/temp scalar input
    w_in = w_in.at[126, :].set(b_i[0])         # lane 126 == 1 on image rows
    w_in = w_in.at[127, :].set(b_m[0])         # lane 127 == 1 on moist/temp rows
    w_in = w_in * scale

    # block-stacked recurrent weights for the lane-blocked fused matmul
    w_hh = jnp.concatenate([whh_i, whh_m], axis=0) * scale                       # (2H, 4H)

    # fold branch FCs + last_fc into per-row head weights + one scalar bias
    wl0, wl1, wl2 = wl[0, 0], wl[1, 0], wl[2, 0]
    w_tail = jnp.zeros((R, 4 * H), jnp.float32)
    w_tail = w_tail.at[0:B, 0:H].set(jnp.broadcast_to((wfc_i[:, 0] * wl0)[None, :], (B, H)))
    w_tail = w_tail.at[B:2 * B, 0:H].set(jnp.broadcast_to((wfc_m[:, 0] * wl1)[None, :], (B, H)))
    w_tail = w_tail.at[2 * B:3 * B, 0:H].set(jnp.broadcast_to((wfc_t[:, 0] * wl2)[None, :], (B, H)))
    b_total = wl0 * bfc_i[0, 0] + wl1 * bfc_m[0, 0] + wl2 * bfc_t[0, 0] + bl[0, 0]
    w_tail = w_tail.at[:, H].set(b_total)      # folded bias lives in lane H of the tail rows

    return jnp.concatenate([w_in, w_hh, w_tail], axis=0).astype(jnp.float32)


# ----------------------- deterministic parameter init ------------------------

def init_lstm(key, input_size, hidden):
    """PyTorch-style LSTM init: uniform(-1/sqrt(H), 1/sqrt(H)), gate order i,f,g,o."""
    k = 1.0 / math.sqrt(hidden)
    k0, k1, k2, k3 = jax.random.split(key, 4)
    w_ih = jax.random.uniform(k0, (4 * hidden, input_size), minval=-k, maxval=k)
    w_hh = jax.random.uniform(k1, (4 * hidden, hidden), minval=-k, maxval=k)
    b_ih = jax.random.uniform(k2, (4 * hidden,), minval=-k, maxval=k)
    b_hh = jax.random.uniform(k3, (4 * hidden,), minval=-k, maxval=k)
    # (D, 4H) / (H, 4H) and a single combined bias row
    return w_ih.T, w_hh.T, (b_ih + b_hh)[None, :]


def init_linear(key, in_features, out_features):
    k = 1.0 / math.sqrt(in_features)
    k0, k1 = jax.random.split(key)
    w = jax.random.uniform(k0, (out_features, in_features), minval=-k, maxval=k)
    b = jax.random.uniform(k1, (out_features,), minval=-k, maxval=k)
    return w.T, b[None, :]


def init_machine_params(key):
    keys = jax.random.split(key, 7)
    return {
        "image_lstm": init_lstm(keys[0], IMG_D, HIDDEN),
        "moisture_lstm": init_lstm(keys[1], 1, HIDDEN),
        "temperature_lstm": init_lstm(keys[2], 1, HIDDEN),  # unused (original module bug)
        "image_fc": init_linear(keys[3], HIDDEN, 1),
        "moisture_fc": init_linear(keys[4], HIDDEN, 1),
        "temperature_fc": init_linear(keys[5], HIDDEN, 1),
        "last_fc": init_linear(keys[6], 3, 1),
    }


# ------------------------- pure-JAX reference model --------------------------

def _reference_forward(params, image, moisture, temperature):
    H = HIDDEN

    def lstm_last_h(x, wih, whh, b):
        Bx = x.shape[0]

        def step(carry, x_t):
            h, c = carry
            gates = x_t @ wih + h @ whh + b
            i = jax.nn.sigmoid(gates[:, 0 * H:1 * H])
            f = jax.nn.sigmoid(gates[:, 1 * H:2 * H])
            g = jnp.tanh(gates[:, 2 * H:3 * H])
            o = jax.nn.sigmoid(gates[:, 3 * H:4 * H])
            c = f * c + i * g
            h = o * jnp.tanh(c)
            return (h, c), None

        init = (jnp.zeros((Bx, H), jnp.float32), jnp.zeros((Bx, H), jnp.float32))
        (h, _), _ = jax.lax.scan(step, init, jnp.transpose(x, (1, 0, 2)))
        return h

    h_img = lstm_last_h(image, *params["image_lstm"])
    h_moi = lstm_last_h(moisture, *params["moisture_lstm"])
    h_tmp = lstm_last_h(temperature, *params["moisture_lstm"])  # reproduced original bug

    wfc_i, bfc_i = params["image_fc"]
    wfc_m, bfc_m = params["moisture_fc"]
    wfc_t, bfc_t = params["temperature_fc"]
    wl, bl = params["last_fc"]
    x = jnp.concatenate([h_img @ wfc_i + bfc_i,
                         h_moi @ wfc_m + bfc_m,
                         h_tmp @ wfc_t + bfc_t], axis=1)
    return x @ wl + bl


# ----------------------------------- main -------------------------------------

if __name__ == "__main__":
    key = jax.random.PRNGKey(0)
    pkey, ikey, mkey, tkey = jax.random.split(key, 4)

    params = init_machine_params(pkey)

    B, T = 2, 8
    image = jax.random.normal(ikey, (B, T, IMG_D), dtype=jnp.float32)
    moisture = jax.random.normal(mkey, (B, T, 1), dtype=jnp.float32)
    temperature = jax.random.normal(tkey, (B, T, 1), dtype=jnp.float32)

    # one-time parameter packing (outside the per-call hot path)
    packed_w = jax.block_until_ready(pack_machine_params(params, batch_size=B))

    out = machine_forward(packed_w, image, moisture, temperature)
    jax.block_until_ready(out)
    assert out.shape == (B, 1) and out.dtype == jnp.float32

    # correctness check against a pure-JAX reference (loose tol: MXU f32 matmul
    # precision / EUP tanh may differ slightly from XLA's default paths)
    ref = _reference_forward(params, image, moisture, temperature)
    max_err = float(jnp.max(jnp.abs(out - ref)))
    assert max_err < 2e-2, f"mismatch vs reference: {max_err}"

    print("KERNEL_OK")
</pallas_src>

<mosaic_0001>
module attributes {stable_mosaic.version = 11 : i64} {
  func.func @_machine_kernel(%arg0: memref<64x128xf32, #tpu.memory_space<vmem>>, %arg1: memref<152x32xf32, #tpu.memory_space<vmem>>, %arg2: memref<2x1xf32, #tpu.memory_space<vmem>>) attributes {dimension_semantics = [], scalar_prefetch = 0 : i64, scratch_operands = 0 : i64, tpu.core_type = #tpu.core_type<tc>} {
    %c0 = arith.constant 0 : index
    %c0_0 = arith.constant 0 : index
    %0 = vector.load %arg1[%c0, %c0_0] : memref<152x32xf32, #tpu.memory_space<vmem>>, vector<128x32xf32>
    %c128 = arith.constant 128 : index
    %c0_1 = arith.constant 0 : index
    %1 = vector.load %arg1[%c128, %c0_1] : memref<152x32xf32, #tpu.memory_space<vmem>>, vector<16x32xf32>
    %c144 = arith.constant 144 : index
    %c0_2 = arith.constant 0 : index
    %2 = vector.load %arg1[%c144, %c0_2] : memref<152x32xf32, #tpu.memory_space<vmem>>, vector<8x32xf32>
    %3 = vector.extract_strided_slice %2 {offsets = [0, 0], sizes = [8, 8], strides = [1, 1]} : vector<8x32xf32> to vector<8x8xf32>
    %4 = vector.extract_strided_slice %2 {offsets = [0, 8], sizes = [2, 1], strides = [1, 1]} : vector<8x32xf32> to vector<2x1xf32>
    %c0_3 = arith.constant 0 : index
    %c0_4 = arith.constant 0 : index
    %5 = vector.load %arg0[%c0_3, %c0_4] : memref<64x128xf32, #tpu.memory_space<vmem>>, vector<64x128xf32>
    %cst = arith.constant dense<0.000000e+00> : vector<64x32xf32>
    %6 = tpu.matmul %5, %0, %cst {dimension_numbers = #tpu.dot_dimension_numbers<[1], [0], [0], [1], [0, 0, 1, 1], [], []>} : vector<64x128xf32>, vector<128x32xf32>, vector<64x32xf32> -> vector<64x32xf32>
    %7 = tpu.iota {dimensions = array<i32: 0>} : vector<8x16xi32>
    %8 = tpu.iota {dimensions = array<i32: 1>} : vector<8x16xi32>
    %c2_i32 = arith.constant 2 : i32
    %9 = vector.broadcast %c2_i32 : i32 to vector<8x16xi32>
    %10 = arith.cmpi slt, %7, %9 : vector<8x16xi32>
    %c2_i32_5 = arith.constant 2 : i32
    %11 = vector.broadcast %c2_i32_5 : i32 to vector<8x16xi32>
    %12 = arith.cmpi sge, %7, %11 : vector<8x16xi32>
    %c6_i32 = arith.constant 6 : i32
    %13 = vector.broadcast %c6_i32 : i32 to vector<8x16xi32>
    %14 = arith.cmpi slt, %7, %13 : vector<8x16xi32>
    %15 = arith.andi %12, %14 : vector<8x16xi1>
    %c8_i32 = arith.constant 8 : i32
    %16 = vector.broadcast %c8_i32 : i32 to vector<8x16xi32>
    %17 = arith.cmpi slt, %8, %16 : vector<8x16xi32>
    %18 = arith.andi %10, %17 : vector<8x16xi1>
    %cst_6 = arith.constant dense<true> : vector<8x16xi1>
    %19 = arith.xori %17, %cst_6 : vector<8x16xi1>
    %20 = arith.andi %15, %19 : vector<8x16xi1>
    %21 = arith.ori %18, %20 : vector<8x16xi1>
    %cst_7 = arith.constant 1.000000e+00 : f32
    %cst_8 = arith.constant 0.000000e+00 : f32
    %22 = vector.broadcast %cst_7 : f32 to vector<8x16xf32>
    %23 = vector.broadcast %cst_8 : f32 to vector<8x16xf32>
    %24 = arith.select %21, %22, %23 : vector<8x16xi1>, vector<8x16xf32>
    %cst_9 = arith.constant 0.000000e+00 : f32
    %25 = vector.broadcast %cst_9 : f32 to vector<8x16xf32>
    %cst_10 = arith.constant 0.000000e+00 : f32
    %26 = vector.broadcast %cst_10 : f32 to vector<8x8xf32>
    %27 = vector.extract_strided_slice %6 {offsets = [0, 0], sizes = [8, 32], strides = [1, 1]} : vector<64x32xf32> to vector<8x32xf32>
    %cst_11 = arith.constant dense<0.000000e+00> : vector<8x32xf32>
    %28 = tpu.matmul %25, %1, %cst_11 {dimension_numbers = #tpu.dot_dimension_numbers<[1], [0], [0], [1], [0, 0, 1, 1], [], []>} : vector<8x16xf32>, vector<16x32xf32>, vector<8x32xf32> -> vector<8x32xf32>
    %29 = arith.addf %27, %28 : vector<8x32xf32>
    %30 = math.tanh %29 : vector<8x32xf32>
    %31 = vector.extract_strided_slice %30 {offsets = [0, 0], sizes = [8, 8], strides = [1, 1]} : vector<8x32xf32> to vector<8x8xf32>
    %cst_12 = arith.constant 5.000000e-01 : f32
    %32 = vector.broadcast %cst_12 : f32 to vector<8x8xf32>
    %33 = arith.mulf %32, %31 : vector<8x8xf32>
    %cst_13 = arith.constant 5.000000e-01 : f32
    %34 = vector.broadcast %cst_13 : f32 to vector<8x8xf32>
    %35 = arith.addf %34, %33 : vector<8x8xf32>
    %36 = vector.extract_strided_slice %30 {offsets = [0, 8], sizes = [8, 8], strides = [1, 1]} : vector<8x32xf32> to vector<8x8xf32>
    %cst_14 = arith.constant 5.000000e-01 : f32
    %37 = vector.broadcast %cst_14 : f32 to vector<8x8xf32>
    %38 = arith.mulf %37, %36 : vector<8x8xf32>
    %cst_15 = arith.constant 5.000000e-01 : f32
    %39 = vector.broadcast %cst_15 : f32 to vector<8x8xf32>
    %40 = arith.addf %39, %38 : vector<8x8xf32>
    %41 = vector.extract_strided_slice %30 {offsets = [0, 16], sizes = [8, 8], strides = [1, 1]} : vector<8x32xf32> to vector<8x8xf32>
    %42 = vector.extract_strided_slice %30 {offsets = [0, 24], sizes = [8, 8], strides = [1, 1]} : vector<8x32xf32> to vector<8x8xf32>
    %cst_16 = arith.constant 5.000000e-01 : f32
    %43 = vector.broadcast %cst_16 : f32 to vector<8x8xf32>
    %44 = arith.mulf %43, %42 : vector<8x8xf32>
    %cst_17 = arith.constant 5.000000e-01 : f32
    %45 = vector.broadcast %cst_17 : f32 to vector<8x8xf32>
    %46 = arith.addf %45, %44 : vector<8x8xf32>
    %47 = arith.mulf %40, %26 : vector<8x8xf32>
    %48 = arith.mulf %35, %41 : vector<8x8xf32>
    %49 = arith.addf %47, %48 : vector<8x8xf32>
    %50 = math.tanh %49 : vector<8x8xf32>
    %51 = arith.mulf %46, %50 : vector<8x8xf32>
    %52 = tpu.concatenate %51, %51 in 1 : vector<8x8xf32>, vector<8x8xf32> -> vector<8x16xf32>
    %53 = arith.mulf %52, %24 : vector<8x16xf32>
    %54 = vector.extract_strided_slice %6 {offsets = [8, 0], sizes = [8, 32], strides = [1, 1]} : vector<64x32xf32> to vector<8x32xf32>
    %cst_18 = arith.constant dense<0.000000e+00> : vector<8x32xf32>
    %55 = tpu.matmul %53, %1, %cst_18 {dimension_numbers = #tpu.dot_dimension_numbers<[1], [0], [0], [1], [0, 0, 1, 1], [], []>} : vector<8x16xf32>, vector<16x32xf32>, vector<8x32xf32> -> vector<8x32xf32>
    %56 = arith.addf %54, %55 : vector<8x32xf32>
    %57 = math.tanh %56 : vector<8x32xf32>
    %58 = vector.extract_strided_slice %57 {offsets = [0, 0], sizes = [8, 8], strides = [1, 1]} : vector<8x32xf32> to vector<8x8xf32>
    %cst_19 = arith.constant 5.000000e-01 : f32
    %59 = vector.broadcast %cst_19 : f32 to vector<8x8xf32>
    %60 = arith.mulf %59, %58 : vector<8x8xf32>
    %cst_20 = arith.constant 5.000000e-01 : f32
    %61 = vector.broadcast %cst_20 : f32 to vector<8x8xf32>
    %62 = arith.addf %61, %60 : vector<8x8xf32>
    %63 = vector.extract_strided_slice %57 {offsets = [0, 8], sizes = [8, 8], strides = [1, 1]} : vector<8x32xf32> to vector<8x8xf32>
    %cst_21 = arith.constant 5.000000e-01 : f32
    %64 = vector.broadcast %cst_21 : f32 to vector<8x8xf32>
    %65 = arith.mulf %64, %63 : vector<8x8xf32>
    %cst_22 = arith.constant 5.000000e-01 : f32
    %66 = vector.broadcast %cst_22 : f32 to vector<8x8xf32>
    %67 = arith.addf %66, %65 : vector<8x8xf32>
    %68 = vector.extract_strided_slice %57 {offsets = [0, 16], sizes = [8, 8], strides = [1, 1]} : vector<8x32xf32> to vector<8x8xf32>
    %69 = vector.extract_strided_slice %57 {offsets = [0, 24], sizes = [8, 8], strides = [1, 1]} : vector<8x32xf32> to vector<8x8xf32>
    %cst_23 = arith.constant 5.000000e-01 : f32
    %70 = vector.broadcast %cst_23 : f32 to vector<8x8xf32>
    %71 = arith.mulf %70, %69 : vector<8x8xf32>
    %cst_24 = arith.constant 5.000000e-01 : f32
    %72 = vector.broadcast %cst_24 : f32 to vector<8x8xf32>
    %73 = arith.addf %72, %71 : vector<8x8xf32>
    %74 = arith.mulf %67, %49 : vector<8x8xf32>
    %75 = arith.mulf %62, %68 : vector<8x8xf32>
    %76 = arith.addf %74, %75 : vector<8x8xf32>
    %77 = math.tanh %76 : vector<8x8xf32>
    %78 = arith.mulf %73, %77 : vector<8x8xf32>
    %79 = tpu.concatenate %78, %78 in 1 : vector<8x8xf32>, vector<8x8xf32> -> vector<8x16xf32>
    %80 = arith.mulf %79, %24 : vector<8x16xf32>
    %81 = vector.extract_strided_slice %6 {offsets = [16, 0], sizes = [8, 32], strides = [1, 1]} : vector<64x32xf32> to vector<8x32xf32>
    %cst_25 = arith.constant dense<0.000000e+00> : vector<8x32xf32>
    %82 = tpu.matmul %80, %1, %cst_25 {dimension_numbers = #tpu.dot_dimension_numbers<[1], [0], [0], [1], [0, 0, 1, 1], [], []>} : vector<8x16xf32>, vector<16x32xf32>, vector<8x32xf32> -> vector<8x32xf32>
    %83 = arith.addf %81, %82 : vector<8x32xf32>
    %84 = math.tanh %83 : vector<8x32xf32>
    %85 = vector.extract_strided_slice %84 {offsets = [0, 0], sizes = [8, 8], strides = [1, 1]} : vector<8x32xf32> to vector<8x8xf32>
    %cst_26 = arith.constant 5.000000e-01 : f32
    %86 = vector.broadcast %cst_26 : f32 to vector<8x8xf32>
    %87 = arith.mulf %86, %85 : vector<8x8xf32>
    %cst_27 = arith.constant 5.000000e-01 : f32
    %88 = vector.broadcast %cst_27 : f32 to vector<8x8xf32>
    %89 = arith.addf %88, %87 : vector<8x8xf32>
    %90 = vector.extract_strided_slice %84 {offsets = [0, 8], sizes = [8, 8], strides = [1, 1]} : vector<8x32xf32> to vector<8x8xf32>
    %cst_28 = arith.constant 5.000000e-01 : f32
    %91 = vector.broadcast %cst_28 : f32 to vector<8x8xf32>
    %92 = arith.mulf %91, %90 : vector<8x8xf32>
    %cst_29 = arith.constant 5.000000e-01 : f32
    %93 = vector.broadcast %cst_29 : f32 to vector<8x8xf32>
    %94 = arith.addf %93, %92 : vector<8x8xf32>
    %95 = vector.extract_strided_slice %84 {offsets = [0, 16], sizes = [8, 8], strides = [1, 1]} : vector<8x32xf32> to vector<8x8xf32>
    %96 = vector.extract_strided_slice %84 {offsets = [0, 24], sizes = [8, 8], strides = [1, 1]} : vector<8x32xf32> to vector<8x8xf32>
    %cst_30 = arith.constant 5.000000e-01 : f32
    %97 = vector.broadcast %cst_30 : f32 to vector<8x8xf32>
    %98 = arith.mulf %97, %96 : vector<8x8xf32>
    %cst_31 = arith.constant 5.000000e-01 : f32
    %99 = vector.broadcast %cst_31 : f32 to vector<8x8xf32>
    %100 = arith.addf %99, %98 : vector<8x8xf32>
    %101 = arith.mulf %94, %76 : vector<8x8xf32>
    %102 = arith.mulf %89, %95 : vector<8x8xf32>
    %103 = arith.addf %101, %102 : vector<8x8xf32>
    %104 = math.tanh %103 : vector<8x8xf32>
    %105 = arith.mulf %100, %104 : vector<8x8xf32>
    %106 = tpu.concatenate %105, %105 in 1 : vector<8x8xf32>, vector<8x8xf32> -> vector<8x16xf32>
    %107 = arith.mulf %106, %24 : vector<8x16xf32>
    %108 = vector.extract_strided_slice %6 {offsets = [24, 0], sizes = [8, 32], strides = [1, 1]} : vector<64x32xf32> to vector<8x32xf32>
    %cst_32 = arith.constant dense<0.000000e+00> : vector<8x32xf32>
    %109 = tpu.matmul %107, %1, %cst_32 {dimension_numbers = #tpu.dot_dimension_numbers<[1], [0], [0], [1], [0, 0, 1, 1], [], []>} : vector<8x16xf32>, vector<16x32xf32>, vector<8x32xf32> -> vector<8x32xf32>
    %110 = arith.addf %108, %109 : vector<8x32xf32>
    %111 = math.tanh %110 : vector<8x32xf32>
    %112 = vector.extract_strided_slice %111 {offsets = [0, 0], sizes = [8, 8], strides = [1, 1]} : vector<8x32xf32> to vector<8x8xf32>
    %cst_33 = arith.constant 5.000000e-01 : f32
    %113 = vector.broadcast %cst_33 : f32 to vector<8x8xf32>
    %114 = arith.mulf %113, %112 : vector<8x8xf32>
    %cst_34 = arith.constant 5.000000e-01 : f32
    %115 = vector.broadcast %cst_34 : f32 to vector<8x8xf32>
    %116 = arith.addf %115, %114 : vector<8x8xf32>
    %117 = vector.extract_strided_slice %111 {offsets = [0, 8], sizes = [8, 8], strides = [1, 1]} : vector<8x32xf32> to vector<8x8xf32>
    %cst_35 = arith.constant 5.000000e-01 : f32
    %118 = vector.broadcast %cst_35 : f32 to vector<8x8xf32>
    %119 = arith.mulf %118, %117 : vector<8x8xf32>
    %cst_36 = arith.constant 5.000000e-01 : f32
    %120 = vector.broadcast %cst_36 : f32 to vector<8x8xf32>
    %121 = arith.addf %120, %119 : vector<8x8xf32>
    %122 = vector.extract_strided_slice %111 {offsets = [0, 16], sizes = [8, 8], strides = [1, 1]} : vector<8x32xf32> to vector<8x8xf32>
    %123 = vector.extract_strided_slice %111 {offsets = [0, 24], sizes = [8, 8], strides = [1, 1]} : vector<8x32xf32> to vector<8x8xf32>
    %cst_37 = arith.constant 5.000000e-01 : f32
    %124 = vector.broadcast %cst_37 : f32 to vector<8x8xf32>
    %125 = arith.mulf %124, %123 : vector<8x8xf32>
    %cst_38 = arith.constant 5.000000e-01 : f32
    %126 = vector.broadcast %cst_38 : f32 to vector<8x8xf32>
    %127 = arith.addf %126, %125 : vector<8x8xf32>
    %128 = arith.mulf %121, %103 : vector<8x8xf32>
    %129 = arith.mulf %116, %122 : vector<8x8xf32>
    %130 = arith.addf %128, %129 : vector<8x8xf32>
    %131 = math.tanh %130 : vector<8x8xf32>
    %132 = arith.mulf %127, %131 : vector<8x8xf32>
    %133 = tpu.concatenate %132, %132 in 1 : vector<8x8xf32>, vector<8x8xf32> -> vector<8x16xf32>
    %134 = arith.mulf %133, %24 : vector<8x16xf32>
    %135 = vector.extract_strided_slice %6 {offsets = [32, 0], sizes = [8, 32], strides = [1, 1]} : vector<64x32xf32> to vector<8x32xf32>
    %cst_39 = arith.constant dense<0.000000e+00> : vector<8x32xf32>
    %136 = tpu.matmul %134, %1, %cst_39 {dimension_numbers = #tpu.dot_dimension_numbers<[1], [0], [0], [1], [0, 0, 1, 1], [], []>} : vector<8x16xf32>, vector<16x32xf32>, vector<8x32xf32> -> vector<8x32xf32>
    %137 = arith.addf %135, %136 : vector<8x32xf32>
    %138 = math.tanh %137 : vector<8x32xf32>
    %139 = vector.extract_strided_slice %138 {offsets = [0, 0], sizes = [8, 8], strides = [1, 1]} : vector<8x32xf32> to vector<8x8xf32>
    %cst_40 = arith.constant 5.000000e-01 : f32
    %140 = vector.broadcast %cst_40 : f32 to vector<8x8xf32>
    %141 = arith.mulf %140, %139 : vector<8x8xf32>
    %cst_41 = arith.constant 5.000000e-01 : f32
    %142 = vector.broadcast %cst_41 : f32 to vector<8x8xf32>
    %143 = arith.addf %142, %141 : vector<8x8xf32>
    %144 = vector.extract_strided_slice %138 {offsets = [0, 8], sizes = [8, 8], strides = [1, 1]} : vector<8x32xf32> to vector<8x8xf32>
    %cst_42 = arith.constant 5.000000e-01 : f32
    %145 = vector.broadcast %cst_42 : f32 to vector<8x8xf32>
    %146 = arith.mulf %145, %144 : vector<8x8xf32>
    %cst_43 = arith.constant 5.000000e-01 : f32
    %147 = vector.broadcast %cst_43 : f32 to vector<8x8xf32>
    %148 = arith.addf %147, %146 : vector<8x8xf32>
    %149 = vector.extract_strided_slice %138 {offsets = [0, 16], sizes = [8, 8], strides = [1, 1]} : vector<8x32xf32> to vector<8x8xf32>
    %150 = vector.extract_strided_slice %138 {offsets = [0, 24], sizes = [8, 8], strides = [1, 1]} : vector<8x32xf32> to vector<8x8xf32>
    %cst_44 = arith.constant 5.000000e-01 : f32
    %151 = vector.broadcast %cst_44 : f32 to vector<8x8xf32>
    %152 = arith.mulf %151, %150 : vector<8x8xf32>
    %cst_45 = arith.constant 5.000000e-01 : f32
    %153 = vector.broadcast %cst_45 : f32 to vector<8x8xf32>
    %154 = arith.addf %153, %152 : vector<8x8xf32>
    %155 = arith.mulf %148, %130 : vector<8x8xf32>
    %156 = arith.mulf %143, %149 : vector<8x8xf32>
    %157 = arith.addf %155, %156 : vector<8x8xf32>
    %158 = math.tanh %157 : vector<8x8xf32>
    %159 = arith.mulf %154, %158 : vector<8x8xf32>
    %160 = tpu.concatenate %159, %159 in 1 : vector<8x8xf32>, vector<8x8xf32> -> vector<8x16xf32>
    %161 = arith.mulf %160, %24 : vector<8x16xf32>
    %162 = vector.extract_strided_slice %6 {offsets = [40, 0], sizes = [8, 32], strides = [1, 1]} : vector<64x32xf32> to vector<8x32xf32>
    %cst_46 = arith.constant dense<0.000000e+00> : vector<8x32xf32>
    %163 = tpu.matmul %161, %1, %cst_46 {dimension_numbers = #tpu.dot_dimension_numbers<[1], [0], [0], [1], [0, 0, 1, 1], [], []>} : vector<8x16xf32>, vector<16x32xf32>, vector<8x32xf32> -> vector<8x32xf32>
    %164 = arith.addf %162, %163 : vector<8x32xf32>
    %165 = math.tanh %164 : vector<8x32xf32>
    %166 = vector.extract_strided_slice %165 {offsets = [0, 0], sizes = [8, 8], strides = [1, 1]} : vector<8x32xf32> to vector<8x8xf32>
    %cst_47 = arith.constant 5.000000e-01 : f32
    %167 = vector.broadcast %cst_47 : f32 to vector<8x8xf32>
    %168 = arith.mulf %167, %166 : vector<8x8xf32>
    %cst_48 = arith.constant 5.000000e-01 : f32
    %169 = vector.broadcast %cst_48 : f32 to vector<8x8xf32>
    %170 = arith.addf %169, %168 : vector<8x8xf32>
    %171 = vector.extract_strided_slice %165 {offsets = [0, 8], sizes = [8, 8], strides = [1, 1]} : vector<8x32xf32> to vector<8x8xf32>
    %cst_49 = arith.constant 5.000000e-01 : f32
    %172 = vector.broadcast %cst_49 : f32 to vector<8x8xf32>
    %173 = arith.mulf %172, %171 : vector<8x8xf32>
    %cst_50 = arith.constant 5.000000e-01 : f32
    %174 = vector.broadcast %cst_50 : f32 to vector<8x8xf32>
    %175 = arith.addf %174, %173 : vector<8x8xf32>
    %176 = vector.extract_strided_slice %165 {offsets = [0, 16], sizes = [8, 8], strides = [1, 1]} : vector<8x32xf32> to vector<8x8xf32>
    %177 = vector.extract_strided_slice %165 {offsets = [0, 24], sizes = [8, 8], strides = [1, 1]} : vector<8x32xf32> to vector<8x8xf32>
    %cst_51 = arith.constant 5.000000e-01 : f32
    %178 = vector.broadcast %cst_51 : f32 to vector<8x8xf32>
    %179 = arith.mulf %178, %177 : vector<8x8xf32>
    %cst_52 = arith.constant 5.000000e-01 : f32
    %180 = vector.broadcast %cst_52 : f32 to vector<8x8xf32>
    %181 = arith.addf %180, %179 : vector<8x8xf32>
    %182 = arith.mulf %175, %157 : vector<8x8xf32>
    %183 = arith.mulf %170, %176 : vector<8x8xf32>
    %184 = arith.addf %182, %183 : vector<8x8xf32>
    %185 = math.tanh %184 : vector<8x8xf32>
    %186 = arith.mulf %181, %185 : vector<8x8xf32>
    %187 = tpu.concatenate %186, %186 in 1 : vector<8x8xf32>, vector<8x8xf32> -> vector<8x16xf32>
    %188 = arith.mulf %187, %24 : vector<8x16xf32>
    %189 = vector.extract_strided_slice %6 {offsets = [48, 0], sizes = [8, 32], strides = [1, 1]} : vector<64x32xf32> to vector<8x32xf32>
    %cst_53 = arith.constant dense<0.000000e+00> : vector<8x32xf32>
    %190 = tpu.matmul %188, %1, %cst_53 {dimension_numbers = #tpu.dot_dimension_numbers<[1], [0], [0], [1], [0, 0, 1, 1], [], []>} : vector<8x16xf32>, vector<16x32xf32>, vector<8x32xf32> -> vector<8x32xf32>
    %191 = arith.addf %189, %190 : vector<8x32xf32>
    %192 = math.tanh %191 : vector<8x32xf32>
    %193 = vector.extract_strided_slice %192 {offsets = [0, 0], sizes = [8, 8], strides = [1, 1]} : vector<8x32xf32> to vector<8x8xf32>
    %cst_54 = arith.constant 5.000000e-01 : f32
    %194 = vector.broadcast %cst_54 : f32 to vector<8x8xf32>
    %195 = arith.mulf %194, %193 : vector<8x8xf32>
    %cst_55 = arith.constant 5.000000e-01 : f32
    %196 = vector.broadcast %cst_55 : f32 to vector<8x8xf32>
    %197 = arith.addf %196, %195 : vector<8x8xf32>
    %198 = vector.extract_strided_slice %192 {offsets = [0, 8], sizes = [8, 8], strides = [1, 1]} : vector<8x32xf32> to vector<8x8xf32>
    %cst_56 = arith.constant 5.000000e-01 : f32
    %199 = vector.broadcast %cst_56 : f32 to vector<8x8xf32>
    %200 = arith.mulf %199, %198 : vector<8x8xf32>
    %cst_57 = arith.constant 5.000000e-01 : f32
    %201 = vector.broadcast %cst_57 : f32 to vector<8x8xf32>
    %202 = arith.addf %201, %200 : vector<8x8xf32>
    %203 = vector.extract_strided_slice %192 {offsets = [0, 16], sizes = [8, 8], strides = [1, 1]} : vector<8x32xf32> to vector<8x8xf32>
    %204 = vector.extract_strided_slice %192 {offsets = [0, 24], sizes = [8, 8], strides = [1, 1]} : vector<8x32xf32> to vector<8x8xf32>
    %cst_58 = arith.constant 5.000000e-01 : f32
    %205 = vector.broadcast %cst_58 : f32 to vector<8x8xf32>
    %206 = arith.mulf %205, %204 : vector<8x8xf32>
    %cst_59 = arith.constant 5.000000e-01 : f32
    %207 = vector.broadcast %cst_59 : f32 to vector<8x8xf32>
    %208 = arith.addf %207, %206 : vector<8x8xf32>
    %209 = arith.mulf %202, %184 : vector<8x8xf32>
    %210 = arith.mulf %197, %203 : vector<8x8xf32>
    %211 = arith.addf %209, %210 : vector<8x8xf32>
    %212 = math.tanh %211 : vector<8x8xf32>
    %213 = arith.mulf %208, %212 : vector<8x8xf32>
    %214 = tpu.concatenate %213, %213 in 1 : vector<8x8xf32>, vector<8x8xf32> -> vector<8x16xf32>
    %215 = arith.mulf %214, %24 : vector<8x16xf32>
    %216 = vector.extract_strided_slice %6 {offsets = [56, 0], sizes = [8, 32], strides = [1, 1]} : vector<64x32xf32> to vector<8x32xf32>
    %cst_60 = arith.constant dense<0.000000e+00> : vector<8x32xf32>
    %217 = tpu.matmul %215, %1, %cst_60 {dimension_numbers = #tpu.dot_dimension_numbers<[1], [0], [0], [1], [0, 0, 1, 1], [], []>} : vector<8x16xf32>, vector<16x32xf32>, vector<8x32xf32> -> vector<8x32xf32>
    %218 = arith.addf %216, %217 : vector<8x32xf32>
    %219 = math.tanh %218 : vector<8x32xf32>
    %220 = vector.extract_strided_slice %219 {offsets = [0, 0], sizes = [8, 8], strides = [1, 1]} : vector<8x32xf32> to vector<8x8xf32>
    %cst_61 = arith.constant 5.000000e-01 : f32
    %221 = vector.broadcast %cst_61 : f32 to vector<8x8xf32>
    %222 = arith.mulf %221, %220 : vector<8x8xf32>
    %cst_62 = arith.constant 5.000000e-01 : f32
    %223 = vector.broadcast %cst_62 : f32 to vector<8x8xf32>
    %224 = arith.addf %223, %222 : vector<8x8xf32>
    %225 = vector.extract_strided_slice %219 {offsets = [0, 8], sizes = [8, 8], strides = [1, 1]} : vector<8x32xf32> to vector<8x8xf32>
    %cst_63 = arith.constant 5.000000e-01 : f32
    %226 = vector.broadcast %cst_63 : f32 to vector<8x8xf32>
    %227 = arith.mulf %226, %225 : vector<8x8xf32>
    %cst_64 = arith.constant 5.000000e-01 : f32
    %228 = vector.broadcast %cst_64 : f32 to vector<8x8xf32>
    %229 = arith.addf %228, %227 : vector<8x8xf32>
    %230 = vector.extract_strided_slice %219 {offsets = [0, 16], sizes = [8, 8], strides = [1, 1]} : vector<8x32xf32> to vector<8x8xf32>
    %231 = vector.extract_strided_slice %219 {offsets = [0, 24], sizes = [8, 8], strides = [1, 1]} : vector<8x32xf32> to vector<8x8xf32>
    %cst_65 = arith.constant 5.000000e-01 : f32
    %232 = vector.broadcast %cst_65 : f32 to vector<8x8xf32>
    %233 = arith.mulf %232, %231 : vector<8x8xf32>
    %cst_66 = arith.constant 5.000000e-01 : f32
    %234 = vector.broadcast %cst_66 : f32 to vector<8x8xf32>
    %235 = arith.addf %234, %233 : vector<8x8xf32>
    %236 = arith.mulf %229, %211 : vector<8x8xf32>
    %237 = arith.mulf %224, %230 : vector<8x8xf32>
    %238 = arith.addf %236, %237 : vector<8x8xf32>
    %239 = math.tanh %238 : vector<8x8xf32>
    %240 = arith.mulf %235, %239 : vector<8x8xf32>
    %241 = arith.mulf %240, %3 : vector<8x8xf32>
    %cst_67 = arith.constant dense<0.000000e+00> : vector<8xf32>
    %242 = vector.multi_reduction <add>, %241, %cst_67 [1] : vector<8x8xf32> to vector<8xf32>
    %243 = vector.shape_cast %242 : vector<8xf32> to vector<8x1xf32>
    %244 = vector.extract_strided_slice %243 {offsets = [0, 0], sizes = [2, 1], strides = [1, 1]} : vector<8x1xf32> to vector<2x1xf32>
    %245 = vector.extract_strided_slice %243 {offsets = [2, 0], sizes = [2, 1], strides = [1, 1]} : vector<8x1xf32> to vector<2x1xf32>
    %246 = arith.addf %244, %245 : vector<2x1xf32>
    %247 = vector.extract_strided_slice %243 {offsets = [4, 0], sizes = [2, 1], strides = [1, 1]} : vector<8x1xf32> to vector<2x1xf32>
    %248 = arith.addf %246, %247 : vector<2x1xf32>
    %249 = arith.addf %248, %4 : vector<2x1xf32>
    %c0_68 = arith.constant 0 : index
    %c0_69 = arith.constant 0 : index
    %250 = vector.load %arg2[%c0_68, %c0_69] : memref<2x1xf32, #tpu.memory_space<vmem>>, vector<2x1xf32>
    tpu.vector_store %arg2[%c0_68, %c0_69], %249 {strides = array<i32>} : memref<2x1xf32, #tpu.memory_space<vmem>>, vector<2x1xf32>,
    return
  }
}

</mosaic_0001>

<llo_original>
// kernel: machine_forward_impl.1
$region0: #{machine_forward_impl.1}
  #allocation0 [shape = 'u32[]', space=smem, size = 0x4, offset = 0x4, fixed_abs, tag = 'smem constant byte address 0x4 - core index']
  #allocation1 [shape = 'u32[144,128]{1,0:T(1,128)}', space=vmem, size = 0x12000, scoped, tag = 'internal scratch']
  %s0 = inlined_call_operand.vmem [shape: f32[64,128], index: 0, kind: input, shape index: {}]
  %s1 = inlined_call_operand.vmem [shape: f32[152,32], index: 1, kind: input, shape index: {}]
  %s2 = inlined_call_operand.vmem [shape: f32[2,1], index: 2, kind: output, shape index: {}]
  %s3 = sld [smem:[#allocation0]]
  $region18: #{machine_forward_impl.1} parent=0
    _
  %s5 = ssub.s32 1, %s3
  %s6 = scalar_select 0, %s5, %s3
  // Predicated region
  $region2: #{machine_forward_impl.1} parent=0 // pred_check
    _
  $region3: #{machine_forward_impl.1} parent=0 // pred_check_branch
    %8 = sbr.rel (0) target = $region5
  $region4: #{machine_forward_impl.1} parent=0 // pred_region
    _
  $region5: #{machine_forward_impl.1} parent=0 // pred_fallthru
    _
  // Predicated region
  $region6: #{machine_forward_impl.1} parent=0 // pred_check
    _
  $region7: #{machine_forward_impl.1} parent=0 // pred_check_branch
    %10 = sbr.rel (0) target = $region9
  $region8: #{machine_forward_impl.1} parent=0 // pred_region
    _
  $region9: #{machine_forward_impl.1} parent=0 // pred_fallthru
    _
  %v11 = vld [vmem:[%s1] sm:$0xff]
  %v12 = vld [vmem:[%s1 + $0x8] sm:$0xff]
  %v13 = vld [vmem:[%s1 + $0x10] sm:$0xff]
  %v14 = vld [vmem:[%s1 + $0x18] sm:$0xff]
  %v15 = vld [vmem:[%s1 + $0x20] sm:$0xff]
  %v16 = vld [vmem:[%s1 + $0x28] sm:$0xff]
  %v17 = vld [vmem:[%s1 + $0x30] sm:$0xff]
  %v18 = vld [vmem:[%s1 + $0x38] sm:$0xff]
  %v19 = vld [vmem:[%s1 + $0x40] sm:$0xff]
  %v20 = vld [vmem:[%s1 + $0x48] sm:$0xff]
  %v21 = vld [vmem:[%s1 + $0x50] sm:$0xff]
  %v22 = vld [vmem:[%s1 + $0x58] sm:$0xff]
  %v23 = vld [vmem:[%s1 + $0x60] sm:$0xff]
  %v24 = vld [vmem:[%s1 + $0x68] sm:$0xff]
  %v25 = vld [vmem:[%s1 + $0x70] sm:$0xff]
  %v26 = vld [vmem:[%s1 + $0x78] sm:$0xff]
  %v27 = vld [vmem:[%s1 + $0x80] sm:$0xff]
  %v28 = vld [vmem:[%s1 + $0x88] sm:$0xff]
  %v29 = vld [vmem:[%s1 + $0x90] sm:$0xff]
  %v30 = vld [vmem:[%s0] sm:$0xff]
  %v31 = vld [vmem:[%s0 + $0x8] sm:$0xff]
  %v32 = vld [vmem:[%s0 + $0x10] sm:$0xff]
  %v33 = vld [vmem:[%s0 + $0x18] sm:$0xff]
  %v34 = vld [vmem:[%s0 + $0x20] sm:$0xff]
  %v35 = vld [vmem:[%s0 + $0x28] sm:$0xff]
  %v36 = vld [vmem:[%s0 + $0x30] sm:$0xff]
  %v37 = vld [vmem:[%s0 + $0x38] sm:$0xff]
  %38 = vmatprep.subr.mxu0 0.0
  %39 = vmatpush1.msra.mxu0 %v26
  %40 = vmatprep.subr.mxu0 0.0
  %41 = vmatpush1.msra.mxu0 %v25
  %42 = vmatprep.subr.mxu0 0.0
  %43 = vmatpush1.msra.mxu0 %v24
  %44 = vmatprep.subr.mxu0 0.0
  %45 = vmatpush1.msra.mxu0 %v23
  %46 = vmatprep.subr.mxu0 0.0
  %47 = vmatpush1.msra.mxu0 %v22
  %48 = vmatprep.subr.mxu0 0.0
  %49 = vmatpush1.msra.mxu0 %v21
  %50 = vmatprep.subr.mxu0 0.0
  %51 = vmatpush1.msra.mxu0 %v20
  %52 = vmatprep.subr.mxu0 0.0
  %53 = vmatpush1.msra.mxu0 %v19
  %54 = vmatprep.subr.mxu0 0.0
  %55 = vmatpush1.msra.mxu0 %v18
  %56 = vmatprep.subr.mxu0 0.0
  %57 = vmatpush1.msra.mxu0 %v17
  %58 = vmatprep.subr.mxu0 0.0
  %59 = vmatpush1.msra.mxu0 %v16
  %60 = vmatprep.subr.mxu0 0.0
  %61 = vmatpush1.msra.mxu0 %v15
  %62 = vmatprep.subr.mxu0 0.0
  %63 = vmatpush1.msra.mxu0 %v14
  %64 = vmatprep.subr.mxu0 0.0
  %65 = vmatpush1.msra.mxu0 %v13
  %66 = vmatprep.subr.mxu0 0.0
  %67 = vmatpush1.msra.mxu0 %v12
  %68 = vmatprep.subr.mxu0 0.0
  %69 = vmatpush1.msra.mxu0 %v11
  %70 = vmatprep.subr.mxu0 0.0
  %71 = vmatpush2.msra.mxu0 0.0
  %72 = vmatprep.subr.mxu0 0.0
  %73 = vmatpush2.msra.mxu0 0.0
  %74 = vmatprep.subr.mxu0 0.0
  %75 = vmatpush2.msra.mxu0 0.0
  %76 = vmatprep.subr.mxu0 0.0
  %77 = vmatpush2.msra.mxu0 0.0
  %78 = vmatprep.subr.mxu0 0.0
  %79 = vmatpush2.msra.mxu0 0.0
  %80 = vmatprep.subr.mxu0 0.0
  %81 = vmatpush2.msra.mxu0 0.0
  %82 = vmatprep.subr.mxu0 0.0
  %83 = vmatpush2.msra.mxu0 0.0
  %84 = vmatprep.subr.mxu0 0.0
  %85 = vmatpush2.msra.mxu0 0.0
  %86 = vmatprep.subr.mxu0 0.0
  %87 = vmatpush2.msra.mxu0 0.0
  %88 = vmatprep.subr.mxu0 0.0
  %89 = vmatpush2.msra.mxu0 0.0
  %90 = vmatprep.subr.mxu0 0.0
  %91 = vmatpush2.msra.mxu0 0.0
  %92 = vmatprep.subr.mxu0 0.0
  %93 = vmatpush2.msra.mxu0 0.0
  %94 = vmatprep.subr.mxu0 0.0
  %95 = vmatpush2.msra.mxu0 0.0
  %96 = vmatprep.subr.mxu0 0.0
  %97 = vmatpush2.msra.mxu0 0.0
  %98 = vmatprep.subr.mxu0 0.0
  %99 = vmatpush2.msra.mxu0 0.0
  %100 = vmatprep.subr.mxu0 0.0
  %101 = vmatpush2.msra.mxu0 0.0
  %102 = vmatprep.mubr.f32.mxu0 0.0
  %103 = vmatmul.mubr.f32.gmra.mxu0 %v30
  %v104 = vpop.f32.mrf.mxu0
  %v105 = vadd.f32 0.0, %v104
  %v106 = vpop.f32.mrf.mxu0
  %107 = vmatprep.mubr.f32.mxu0 0.0
  %108 = vmatmul.mubr.f32.gmra.mxu0 %v31
  %v109 = vpop.f32.mrf.mxu0
  %v110 = vadd.f32 0.0, %v109
  %v111 = vpop.f32.mrf.mxu0
  %112 = vmatprep.mubr.f32.mxu0 0.0
  %113 = vmatmul.mubr.f32.gmra.mxu0 %v32
  %v114 = vpop.f32.mrf.mxu0
  %v115 = vadd.f32 0.0, %v114
  %v116 = vpop.f32.mrf.mxu0
  %117 = vmatprep.mubr.f32.mxu0 0.0
  %118 = vmatmul.mubr.f32.gmra.mxu0 %v33
  %v119 = vpop.f32.mrf.mxu0
  %v120 = vadd.f32 0.0, %v119
  %v121 = vpop.f32.mrf.mxu0
  %122 = vmatprep.mubr.f32.mxu0 0.0
  %123 = vmatmul.mubr.f32.gmra.mxu0 %v34
  %v124 = vpop.f32.mrf.mxu0
  %v125 = vadd.f32 0.0, %v124
  %v126 = vpop.f32.mrf.mxu0
  %127 = vmatprep.mubr.f32.mxu0 0.0
  %128 = vmatmul.mubr.f32.gmra.mxu0 %v35
  %v129 = vpop.f32.mrf.mxu0
  %v130 = vadd.f32 0.0, %v129
  %v131 = vpop.f32.mrf.mxu0
  %132 = vmatprep.mubr.f32.mxu0 0.0
  %133 = vmatmul.mubr.f32.gmra.mxu0 %v36
  %v134 = vpop.f32.mrf.mxu0
  %v135 = vadd.f32 0.0, %v134
  %v136 = vpop.f32.mrf.mxu0
  %137 = vmatprep.mubr.f32.mxu0 0.0
  %138 = vmatmul.mubr.f32.gmra.mxu0 %v37
  %v139 = vpop.f32.mrf.mxu0
  %v140 = vadd.f32 0.0, %v139
  %v141 = vpop.f32.mrf.mxu0
  %142 = vdwg.mxu0
  %v143 = vlaneseq
  %v144 = vshrl.u32 %v143, 7
  %v145 = vlaneseq
  %v146 = vand.u32 %v145, 127
  %vm147 = vcmp.lt.s32.totalorder %v144, 2
  %vm148 = vcmp.ge.s32.totalorder %v144, 2
  %vm149 = vcmp.lt.s32.totalorder %v144, 6
  %vm150 = vmand %vm148, %vm149
  %vm151 = vcmp.lt.s32.totalorder %v146, 8
  %vm152 = vmand %vm147, %vm151
  %vm153 = vmxor %vm151, 1
  %vm154 = vmand %vm150, %vm153
  %vm155 = vmor %vm152, %vm154
  %v156 = vsel %vm155, 1.0, 0.0
  %vm157 = vcmask 130048
  %v159 = vsel %vm157, 0.0, 0
  %161 = vmatprep.subr.mxu0 0.0
  %162 = vmatpush1.msra.mxu0 0.0
  %163 = vmatprep.subr.mxu0 0.0
  %164 = vmatpush1.msra.mxu0 0.0
  %165 = vmatprep.subr.mxu0 0.0
  %166 = vmatpush1.msra.mxu0 0.0
  %167 = vmatprep.subr.mxu0 0.0
  %168 = vmatpush1.msra.mxu0 0.0
  %169 = vmatprep.subr.mxu0 0.0
  %170 = vmatpush1.msra.mxu0 0.0
  %171 = vmatprep.subr.mxu0 0.0
  %172 = vmatpush1.msra.mxu0 0.0
  %173 = vmatprep.subr.mxu0 0.0
  %174 = vmatpush1.msra.mxu0 0.0
  %175 = vmatprep.subr.mxu0 0.0
  %176 = vmatpush1.msra.mxu0 0.0
  %177 = vmatprep.subr.mxu0 0.0
  %178 = vmatpush1.msra.mxu0 0.0
  %179 = vmatprep.subr.mxu0 0.0
  %180 = vmatpush1.msra.mxu0 0.0
  %181 = vmatprep.subr.mxu0 0.0
  %182 = vmatpush1.msra.mxu0 0.0
  %183 = vmatprep.subr.mxu0 0.0
  %184 = vmatpush1.msra.mxu0 0.0
  %185 = vmatprep.subr.mxu0 0.0
  %186 = vmatpush1.msra.mxu0 0.0
  %187 = vmatprep.subr.mxu0 0.0
  %188 = vmatpush1.msra.mxu0 0.0
  %189 = vmatprep.subr.mxu0 0.0
  %190 = vmatpush1.msra.mxu0 %v28
  %191 = vmatprep.subr.mxu0 0.0
  %192 = vmatpush1.msra.mxu0 %v27
  %193 = vmatprep.subr.mxu0 0.0
  %194 = vmatpush2.msra.mxu0 0.0
  %195 = vmatprep.subr.mxu0 0.0
  %196 = vmatpush2.msra.mxu0 0.0
  %197 = vmatprep.subr.mxu0 0.0
  %198 = vmatpush2.msra.mxu0 0.0
  %199 = vmatprep.subr.mxu0 0.0
  %200 = vmatpush2.msra.mxu0 0.0
  %201 = vmatprep.subr.mxu0 0.0
  %202 = vmatpush2.msra.mxu0 0.0
  %203 = vmatprep.subr.mxu0 0.0
  %204 = vmatpush2.msra.mxu0 0.0
  %205 = vmatprep.subr.mxu0 0.0
  %206 = vmatpush2.msra.mxu0 0.0
  %207 = vmatprep.subr.mxu0 0.0
  %208 = vmatpush2.msra.mxu0 0.0
  %209 = vmatprep.subr.mxu0 0.0
  %210 = vmatpush2.msra.mxu0 0.0
  %211 = vmatprep.subr.mxu0 0.0
  %212 = vmatpush2.msra.mxu0 0.0
  %213 = vmatprep.subr.mxu0 0.0
  %214 = vmatpush2.msra.mxu0 0.0
  %215 = vmatprep.subr.mxu0 0.0
  %216 = vmatpush2.msra.mxu0 0.0
  %217 = vmatprep.subr.mxu0 0.0
  %218 = vmatpush2.msra.mxu0 0.0
  %219 = vmatprep.subr.mxu0 0.0
  %220 = vmatpush2.msra.mxu0 0.0
  %221 = vmatprep.subr.mxu0 0.0
  %222 = vmatpush2.msra.mxu0 0.0
  %223 = vmatprep.subr.mxu0 0.0
  %224 = vmatpush2.msra.mxu0 0.0
  %225 = vmatprep.mubr.f32.mxu0 0.0
  %226 = vmatmul.mubr.f32.gmra.mxu0 %v159
  %v227 = vpop.f32.mrf.mxu0
  %v228 = vadd.f32 0.0, %v227
  %v229 = vpop.f32.mrf.mxu0
  %230 = vdwg.mxu0
  %v231 = vadd.f32 %v105, %v228
  %v232 = vtanh.pop %v231
  %v233 = vmul.f32 %v232, 0.5
  %v234 = vadd.f32 %v233, 0.5
  %v235 = vmul.f32 %v234, 0.0
  %237 = vrot.lane.b32.xlu0 %v232, 112
  %v238 = vpop.permute.xlu0 %237
  %v240 = vmul.f32 %v234, %v238
  %242 = vrot.lane.b32.xlu0 %v240, 8
  %v243 = vpop.permute.xlu0 %242
  %v245 = vadd.f32 %v235, %v243
  %v246 = vtanh.pop %v245
  %248 = vrot.lane.b32.xlu0 %v246, 16
  %v249 = vpop.permute.xlu0 %248
  %v251 = vmul.f32 %v234, %v249
  %253 = vrot.lane.b32.xlu0 %v251, 104
  %v254 = vpop.permute.xlu0 %253
  %256 = vrot.lane.b32.xlu0 %v251, 112
  %v257 = vpop.permute.xlu0 %256
  %vm259 = vcmask 64512
  %v260 = vsel %vm259, %v254, %v257
  %v261 = vmul.f32 %v260, %v156
  %v263 = vsel %vm157, %v261, 0
  %265 = vmatprep.subr.mxu0 0.0
  %266 = vmatpush1.msra.mxu0 0.0
  %267 = vmatprep.subr.mxu0 0.0
  %268 = vmatpush1.msra.mxu0 0.0
  %269 = vmatprep.subr.mxu0 0.0
  %270 = vmatpush1.msra.mxu0 0.0
  %271 = vmatprep.subr.mxu0 0.0
  %272 = vmatpush1.msra.mxu0 0.0
  %273 = vmatprep.subr.mxu0 0.0
  %274 = vmatpush1.msra.mxu0 0.0
  %275 = vmatprep.subr.mxu0 0.0
  %276 = vmatpush1.msra.mxu0 0.0
  %277 = vmatprep.subr.mxu0 0.0
  %278 = vmatpush1.msra.mxu0 0.0
  %279 = vmatprep.subr.mxu0 0.0
  %280 = vmatpush1.msra.mxu0 0.0
  %281 = vmatprep.subr.mxu0 0.0
  %282 = vmatpush1.msra.mxu0 0.0
  %283 = vmatprep.subr.mxu0 0.0
  %284 = vmatpush1.msra.mxu0 0.0
  %285 = vmatprep.subr.mxu0 0.0
  %286 = vmatpush1.msra.mxu0 0.0
  %287 = vmatprep.subr.mxu0 0.0
  %288 = vmatpush1.msra.mxu0 0.0
  %289 = vmatprep.subr.mxu0 0.0
  %290 = vmatpush1.msra.mxu0 0.0
  %291 = vmatprep.subr.mxu0 0.0
  %292 = vmatpush1.msra.mxu0 0.0
  %293 = vmatprep.subr.mxu0 0.0
  %294 = vmatpush1.msra.mxu0 %v28
  %295 = vmatprep.subr.mxu0 0.0
  %296 = vmatpush1.msra.mxu0 %v27
  %297 = vmatprep.subr.mxu0 0.0
  %298 = vmatpush2.msra.mxu0 0.0
  %299 = vmatprep.subr.mxu0 0.0
  %300 = vmatpush2.msra.mxu0 0.0
  %301 = vmatprep.subr.mxu0 0.0
  %302 = vmatpush2.msra.mxu0 0.0
  %303 = vmatprep.subr.mxu0 0.0
  %304 = vmatpush2.msra.mxu0 0.0
  %305 = vmatprep.subr.mxu0 0.0
  %306 = vmatpush2.msra.mxu0 0.0
  %307 = vmatprep.subr.mxu0 0.0
  %308 = vmatpush2.msra.mxu0 0.0
  %309 = vmatprep.subr.mxu0 0.0
  %310 = vmatpush2.msra.mxu0 0.0
  %311 = vmatprep.subr.mxu0 0.0
  %312 = vmatpush2.msra.mxu0 0.0
  %313 = vmatprep.subr.mxu0 0.0
  %314 = vmatpush2.msra.mxu0 0.0
  %315 = vmatprep.subr.mxu0 0.0
  %316 = vmatpush2.msra.mxu0 0.0
  %317 = vmatprep.subr.mxu0 0.0
  %318 = vmatpush2.msra.mxu0 0.0
  %319 = vmatprep.subr.mxu0 0.0
  %320 = vmatpush2.msra.mxu0 0.0
  %321 = vmatprep.subr.mxu0 0.0
  %322 = vmatpush2.msra.mxu0 0.0
  %323 = vmatprep.subr.mxu0 0.0
  %324 = vmatpush2.msra.mxu0 0.0
  %325 = vmatprep.subr.mxu0 0.0
  %326 = vmatpush2.msra.mxu0 0.0
  %327 = vmatprep.subr.mxu0 0.0
  %328 = vmatpush2.msra.mxu0 0.0
  %329 = vmatprep.mubr.f32.mxu0 0.0
  %330 = vmatmul.mubr.f32.gmra.mxu0 %v263
  %v331 = vpop.f32.mrf.mxu0
  %v332 = vadd.f32 0.0, %v331
  %v333 = vpop.f32.mrf.mxu0
  %334 = vdwg.mxu0
  %v335 = vadd.f32 %v110, %v332
  %v336 = vtanh.pop %v335
  %v337 = vmul.f32 %v336, 0.5
  %v338 = vadd.f32 %v337, 0.5
  %v339 = vmul.f32 %v338, %v245
  %341 = vrot.lane.b32.xlu0 %v336, 112
  %v342 = vpop.permute.xlu0 %341
  %v344 = vmul.f32 %v338, %v342
  %346 = vrot.lane.b32.xlu0 %v344, 8
  %v347 = vpop.permute.xlu0 %346
  %v349 = vadd.f32 %v339, %v347
  %v350 = vtanh.pop %v349
  %352 = vrot.lane.b32.xlu0 %v350, 16
  %v353 = vpop.permute.xlu0 %352
  %v355 = vmul.f32 %v338, %v353
  %357 = vrot.lane.b32.xlu0 %v355, 104
  %v358 = vpop.permute.xlu0 %357
  %360 = vrot.lane.b32.xlu0 %v355, 112
  %v361 = vpop.permute.xlu0 %360
  %v363 = vsel %vm259, %v358, %v361
  %v364 = vmul.f32 %v363, %v156
  %v366 = vsel %vm157, %v364, 0
  %368 = vmatprep.subr.mxu0 0.0
  %369 = vmatpush1.msra.mxu0 0.0
  %370 = vmatprep.subr.mxu0 0.0
  %371 = vmatpush1.msra.mxu0 0.0
  %372 = vmatprep.subr.mxu0 0.0
  %373 = vmatpush1.msra.mxu0 0.0
  %374 = vmatprep.subr.mxu0 0.0
  %375 = vmatpush1.msra.mxu0 0.0
  %376 = vmatprep.subr.mxu0 0.0
  %377 = vmatpush1.msra.mxu0 0.0
  %378 = vmatprep.subr.mxu0 0.0
  %379 = vmatpush1.msra.mxu0 0.0
  %380 = vmatprep.subr.mxu0 0.0
  %381 = vmatpush1.msra.mxu0 0.0
  %382 = vmatprep.subr.mxu0 0.0
  %383 = vmatpush1.msra.mxu0 0.0
  %384 = vmatprep.subr.mxu0 0.0
  %385 = vmatpush1.msra.mxu0 0.0
  %386 = vmatprep.subr.mxu0 0.0
  %387 = vmatpush1.msra.mxu0 0.0
  %388 = vmatprep.subr.mxu0 0.0
  %389 = vmatpush1.msra.mxu0 0.0
  %390 = vmatprep.subr.mxu0 0.0
  %391 = vmatpush1.msra.mxu0 0.0
  %392 = vmatprep.subr.mxu0 0.0
  %393 = vmatpush1.msra.mxu0 0.0
  %394 = vmatprep.subr.mxu0 0.0
  %395 = vmatpush1.msra.mxu0 0.0
  %396 = vmatprep.subr.mxu0 0.0
  %397 = vmatpush1.msra.mxu0 %v28
  %398 = vmatprep.subr.mxu0 0.0
  %399 = vmatpush1.msra.mxu0 %v27
  %400 = vmatprep.subr.mxu0 0.0
  %401 = vmatpush2.msra.mxu0 0.0
  %402 = vmatprep.subr.mxu0 0.0
  %403 = vmatpush2.msra.mxu0 0.0
  %404 = vmatprep.subr.mxu0 0.0
  %405 = vmatpush2.msra.mxu0 0.0
  %406 = vmatprep.subr.mxu0 0.0
  %407 = vmatpush2.msra.mxu0 0.0
  %408 = vmatprep.subr.mxu0 0.0
  %409 = vmatpush2.msra.mxu0 0.0
  %410 = vmatprep.subr.mxu0 0.0
  %411 = vmatpush2.msra.mxu0 0.0
  %412 = vmatprep.subr.mxu0 0.0
  %413 = vmatpush2.msra.mxu0 0.0
  %414 = vmatprep.subr.mxu0 0.0
  %415 = vmatpush2.msra.mxu0 0.0
  %416 = vmatprep.subr.mxu0 0.0
  %417 = vmatpush2.msra.mxu0 0.0
  %418 = vmatprep.subr.mxu0 0.0
  %419 = vmatpush2.msra.mxu0 0.0
  %420 = vmatprep.subr.mxu0 0.0
  %421 = vmatpush2.msra.mxu0 0.0
  %422 = vmatprep.subr.mxu0 0.0
  %423 = vmatpush2.msra.mxu0 0.0
  %424 = vmatprep.subr.mxu0 0.0
  %425 = vmatpush2.msra.mxu0 0.0
  %426 = vmatprep.subr.mxu0 0.0
  %427 = vmatpush2.msra.mxu0 0.0
  %428 = vmatprep.subr.mxu0 0.0
  %429 = vmatpush2.msra.mxu0 0.0
  %430 = vmatprep.subr.mxu0 0.0
  %431 = vmatpush2.msra.mxu0 0.0
  %432 = vmatprep.mubr.f32.mxu0 0.0
  %433 = vmatmul.mubr.f32.gmra.mxu0 %v366
  %v434 = vpop.f32.mrf.mxu0
  %v435 = vadd.f32 0.0, %v434
  %v436 = vpop.f32.mrf.mxu0
  %437 = vdwg.mxu0
  %v438 = vadd.f32 %v115, %v435
  %v439 = vtanh.pop %v438
  %v440 = vmul.f32 %v439, 0.5
  %v441 = vadd.f32 %v440, 0.5
  %v442 = vmul.f32 %v441, %v349
  %444 = vrot.lane.b32.xlu0 %v439, 112
  %v445 = vpop.permute.xlu0 %444
  %v447 = vmul.f32 %v441, %v445
  %449 = vrot.lane.b32.xlu0 %v447, 8
  %v450 = vpop.permute.xlu0 %449
  %v452 = vadd.f32 %v442, %v450
  %v453 = vtanh.pop %v452
  %455 = vrot.lane.b32.xlu0 %v453, 16
  %v456 = vpop.permute.xlu0 %455
  %v458 = vmul.f32 %v441, %v456
  %460 = vrot.lane.b32.xlu0 %v458, 104
  %v461 = vpop.permute.xlu0 %460
  %463 = vrot.lane.b32.xlu0 %v458, 112
  %v464 = vpop.permute.xlu0 %463
  %v466 = vsel %vm259, %v461, %v464
  %v467 = vmul.f32 %v466, %v156
  %v469 = vsel %vm157, %v467, 0
  %471 = vmatprep.subr.mxu0 0.0
  %472 = vmatpush1.msra.mxu0 0.0
  %473 = vmatprep.subr.mxu0 0.0
  %474 = vmatpush1.msra.mxu0 0.0
  %475 = vmatprep.subr.mxu0 0.0
  %476 = vmatpush1.msra.mxu0 0.0
  %477 = vmatprep.subr.mxu0 0.0
  %478 = vmatpush1.msra.mxu0 0.0
  %479 = vmatprep.subr.mxu0 0.0
  %480 = vmatpush1.msra.mxu0 0.0
  %481 = vmatprep.subr.mxu0 0.0
  %482 = vmatpush1.msra.mxu0 0.0
  %483 = vmatprep.subr.mxu0 0.0
  %484 = vmatpush1.msra.mxu0 0.0
  %485 = vmatprep.subr.mxu0 0.0
  %486 = vmatpush1.msra.mxu0 0.0
  %487 = vmatprep.subr.mxu0 0.0
  %488 = vmatpush1.msra.mxu0 0.0
  %489 = vmatprep.subr.mxu0 0.0
  %490 = vmatpush1.msra.mxu0 0.0
  %491 = vmatprep.subr.mxu0 0.0
  %492 = vmatpush1.msra.mxu0 0.0
  %493 = vmatprep.subr.mxu0 0.0
  %494 = vmatpush1.msra.mxu0 0.0
  %495 = vmatprep.subr.mxu0 0.0
  %496 = vmatpush1.msra.mxu0 0.0
  %497 = vmatprep.subr.mxu0 0.0
  %498 = vmatpush1.msra.mxu0 0.0
  %499 = vmatprep.subr.mxu0 0.0
  %500 = vmatpush1.msra.mxu0 %v28
  %501 = vmatprep.subr.mxu0 0.0
  %502 = vmatpush1.msra.mxu0 %v27
  %503 = vmatprep.subr.mxu0 0.0
  %504 = vmatpush2.msra.mxu0 0.0
  %505 = vmatprep.subr.mxu0 0.0
  %506 = vmatpush2.msra.mxu0 0.0
  %507 = vmatprep.subr.mxu0 0.0
  %508 = vmatpush2.msra.mxu0 0.0
  %509 = vmatprep.subr.mxu0 0.0
  %510 = vmatpush2.msra.mxu0 0.0
  %511 = vmatprep.subr.mxu0 0.0
  %512 = vmatpush2.msra.mxu0 0.0
  %513 = vmatprep.subr.mxu0 0.0
  %514 = vmatpush2.msra.mxu0 0.0
  %515 = vmatprep.subr.mxu0 0.0
  %516 = vmatpush2.msra.mxu0 0.0
  %517 = vmatprep.subr.mxu0 0.0
  %518 = vmatpush2.msra.mxu0 0.0
  %519 = vmatprep.subr.mxu0 0.0
  %520 = vmatpush2.msra.mxu0 0.0
  %521 = vmatprep.subr.mxu0 0.0
  %522 = vmatpush2.msra.mxu0 0.0
  %523 = vmatprep.subr.mxu0 0.0
  %524 = vmatpush2.msra.mxu0 0.0
  %525 = vmatprep.subr.mxu0 0.0
  %526 = vmatpush2.msra.mxu0 0.0
  %527 = vmatprep.subr.mxu0 0.0
  %528 = vmatpush2.msra.mxu0 0.0
  %529 = vmatprep.subr.mxu0 0.0
  %530 = vmatpush2.msra.mxu0 0.0
  %531 = vmatprep.subr.mxu0 0.0
  %532 = vmatpush2.msra.mxu0 0.0
  %533 = vmatprep.subr.mxu0 0.0
  %534 = vmatpush2.msra.mxu0 0.0
  %535 = vmatprep.mubr.f32.mxu0 0.0
  %536 = vmatmul.mubr.f32.gmra.mxu0 %v469
  %v537 = vpop.f32.mrf.mxu0
  %v538 = vadd.f32 0.0, %v537
  %v539 = vpop.f32.mrf.mxu0
  %540 = vdwg.mxu0
  %v541 = vadd.f32 %v120, %v538
  %v542 = vtanh.pop %v541
  %v543 = vmul.f32 %v542, 0.5
  %v544 = vadd.f32 %v543, 0.5
  %v545 = vmul.f32 %v544, %v452
  %547 = vrot.lane.b32.xlu0 %v542, 112
  %v548 = vpop.permute.xlu0 %547
  %v550 = vmul.f32 %v544, %v548
  %552 = vrot.lane.b32.xlu0 %v550, 8
  %v553 = vpop.permute.xlu0 %552
  %v555 = vadd.f32 %v545, %v553
  %v556 = vtanh.pop %v555
  %558 = vrot.lane.b32.xlu0 %v556, 16
  %v559 = vpop.permute.xlu0 %558
  %v561 = vmul.f32 %v544, %v559
  %563 = vrot.lane.b32.xlu0 %v561, 104
  %v564 = vpop.permute.xlu0 %563
  %566 = vrot.lane.b32.xlu0 %v561, 112
  %v567 = vpop.permute.xlu0 %566
  %v569 = vsel %vm259, %v564, %v567
  %v570 = vmul.f32 %v569, %v156
  %v572 = vsel %vm157, %v570, 0
  %574 = vmatprep.subr.mxu0 0.0
  %575 = vmatpush1.msra.mxu0 0.0
  %576 = vmatprep.subr.mxu0 0.0
  %577 = vmatpush1.msra.mxu0 0.0
  %578 = vmatprep.subr.mxu0 0.0
  %579 = vmatpush1.msra.mxu0 0.0
  %580 = vmatprep.subr.mxu0 0.0
  %581 = vmatpush1.msra.mxu0 0.0
  %582 = vmatprep.subr.mxu0 0.0
  %583 = vmatpush1.msra.mxu0 0.0
  %584 = vmatprep.subr.mxu0 0.0
  %585 = vmatpush1.msra.mxu0 0.0
  %586 = vmatprep.subr.mxu0 0.0
  %587 = vmatpush1.msra.mxu0 0.0
  %588 = vmatprep.subr.mxu0 0.0
  %589 = vmatpush1.msra.mxu0 0.0
  %590 = vmatprep.subr.mxu0 0.0
  %591 = vmatpush1.msra.mxu0 0.0
  %592 = vmatprep.subr.mxu0 0.0
  %593 = vmatpush1.msra.mxu0 0.0
  %594 = vmatprep.subr.mxu0 0.0
  %595 = vmatpush1.msra.mxu0 0.0
  %596 = vmatprep.subr.mxu0 0.0
  %597 = vmatpush1.msra.mxu0 0.0
  %598 = vmatprep.subr.mxu0 0.0
  %599 = vmatpush1.msra.mxu0 0.0
  %600 = vmatprep.subr.mxu0 0.0
  %601 = vmatpush1.msra.mxu0 0.0
  %602 = vmatprep.subr.mxu0 0.0
  %603 = vmatpush1.msra.mxu0 %v28
  %604 = vmatprep.subr.mxu0 0.0
  %605 = vmatpush1.msra.mxu0 %v27
  %606 = vmatprep.subr.mxu0 0.0
  %607 = vmatpush2.msra.mxu0 0.0
  %608 = vmatprep.subr.mxu0 0.0
  %609 = vmatpush2.msra.mxu0 0.0
  %610 = vmatprep.subr.mxu0 0.0
  %611 = vmatpush2.msra.mxu0 0.0
  %612 = vmatprep.subr.mxu0 0.0
  %613 = vmatpush2.msra.mxu0 0.0
  %614 = vmatprep.subr.mxu0 0.0
  %615 = vmatpush2.msra.mxu0 0.0
  %616 = vmatprep.subr.mxu0 0.0
  %617 = vmatpush2.msra.mxu0 0.0
  %618 = vmatprep.subr.mxu0 0.0
  %619 = vmatpush2.msra.mxu0 0.0
  %620 = vmatprep.subr.mxu0 0.0
  %621 = vmatpush2.msra.mxu0 0.0
  %622 = vmatprep.subr.mxu0 0.0
  %623 = vmatpush2.msra.mxu0 0.0
  %624 = vmatprep.subr.mxu0 0.0
  %625 = vmatpush2.msra.mxu0 0.0
  %626 = vmatprep.subr.mxu0 0.0
  %627 = vmatpush2.msra.mxu0 0.0
  %628 = vmatprep.subr.mxu0 0.0
  %629 = vmatpush2.msra.mxu0 0.0
  %630 = vmatprep.subr.mxu0 0.0
  %631 = vmatpush2.msra.mxu0 0.0
  %632 = vmatprep.subr.mxu0 0.0
  %633 = vmatpush2.msra.mxu0 0.0
  %634 = vmatprep.subr.mxu0 0.0
  %635 = vmatpush2.msra.mxu0 0.0
  %636 = vmatprep.subr.mxu0 0.0
  %637 = vmatpush2.msra.mxu0 0.0
  %638 = vmatprep.mubr.f32.mxu0 0.0
  %639 = vmatmul.mubr.f32.gmra.mxu0 %v572
  %v640 = vpop.f32.mrf.mxu0
  %v641 = vadd.f32 0.0, %v640
  %v642 = vpop.f32.mrf.mxu0
  %643 = vdwg.mxu0
  %v644 = vadd.f32 %v125, %v641
  %v645 = vtanh.pop %v644
  %v646 = vmul.f32 %v645, 0.5
  %v647 = vadd.f32 %v646, 0.5
  %v648 = vmul.f32 %v647, %v555
  %650 = vrot.lane.b32.xlu0 %v645, 112
  %v651 = vpop.permute.xlu0 %650
  %v653 = vmul.f32 %v647, %v651
  %655 = vrot.lane.b32.xlu0 %v653, 8
  %v656 = vpop.permute.xlu0 %655
  %v658 = vadd.f32 %v648, %v656
  %v659 = vtanh.pop %v658
  %661 = vrot.lane.b32.xlu0 %v659, 16
  %v662 = vpop.permute.xlu0 %661
  %v664 = vmul.f32 %v647, %v662
  %666 = vrot.lane.b32.xlu0 %v664, 104
  %v667 = vpop.permute.xlu0 %666
  %669 = vrot.lane.b32.xlu0 %v664, 112
  %v670 = vpop.permute.xlu0 %669
  %v672 = vsel %vm259, %v667, %v670
  %v673 = vmul.f32 %v672, %v156
  %v675 = vsel %vm157, %v673, 0
  %677 = vmatprep.subr.mxu0 0.0
  %678 = vmatpush1.msra.mxu0 0.0
  %679 = vmatprep.subr.mxu0 0.0
  %680 = vmatpush1.msra.mxu0 0.0
  %681 = vmatprep.subr.mxu0 0.0
  %682 = vmatpush1.msra.mxu0 0.0
  %683 = vmatprep.subr.mxu0 0.0
  %684 = vmatpush1.msra.mxu0 0.0
  %685 = vmatprep.subr.mxu0 0.0
  %686 = vmatpush1.msra.mxu0 0.0
  %687 = vmatprep.subr.mxu0 0.0
  %688 = vmatpush1.msra.mxu0 0.0
  %689 = vmatprep.subr.mxu0 0.0
  %690 = vmatpush1.msra.mxu0 0.0
  %691 = vmatprep.subr.mxu0 0.0
  %692 = vmatpush1.msra.mxu0 0.0
  %693 = vmatprep.subr.mxu0 0.0
  %694 = vmatpush1.msra.mxu0 0.0
  %695 = vmatprep.subr.mxu0 0.0
  %696 = vmatpush1.msra.mxu0 0.0
  %697 = vmatprep.subr.mxu0 0.0
  %698 = vmatpush1.msra.mxu0 0.0
  %699 = vmatprep.subr.mxu0 0.0
  %700 = vmatpush1.msra.mxu0 0.0
  %701 = vmatprep.subr.mxu0 0.0
  %702 = vmatpush1.msra.mxu0 0.0
  %703 = vmatprep.subr.mxu0 0.0
  %704 = vmatpush1.msra.mxu0 0.0
  %705 = vmatprep.subr.mxu0 0.0
  %706 = vmatpush1.msra.mxu0 %v28
  %707 = vmatprep.subr.mxu0 0.0
  %708 = vmatpush1.msra.mxu0 %v27
  %709 = vmatprep.subr.mxu0 0.0
  %710 = vmatpush2.msra.mxu0 0.0
  %711 = vmatprep.subr.mxu0 0.0
  %712 = vmatpush2.msra.mxu0 0.0
  %713 = vmatprep.subr.mxu0 0.0
  %714 = vmatpush2.msra.mxu0 0.0
  %715 = vmatprep.subr.mxu0 0.0
  %716 = vmatpush2.msra.mxu0 0.0
  %717 = vmatprep.subr.mxu0 0.0
  %718 = vmatpush2.msra.mxu0 0.0
  %719 = vmatprep.subr.mxu0 0.0
  %720 = vmatpush2.msra.mxu0 0.0
  %721 = vmatprep.subr.mxu0 0.0
  %722 = vmatpush2.msra.mxu0 0.0
  %723 = vmatprep.subr.mxu0 0.0
  %724 = vmatpush2.msra.mxu0 0.0
  %725 = vmatprep.subr.mxu0 0.0
  %726 = vmatpush2.msra.mxu0 0.0
  %727 = vmatprep.subr.mxu0 0.0
  %728 = vmatpush2.msra.mxu0 0.0
  %729 = vmatprep.subr.mxu0 0.0
  %730 = vmatpush2.msra.mxu0 0.0
  %731 = vmatprep.subr.mxu0 0.0
  %732 = vmatpush2.msra.mxu0 0.0
  %733 = vmatprep.subr.mxu0 0.0
  %734 = vmatpush2.msra.mxu0 0.0
  %735 = vmatprep.subr.mxu0 0.0
  %736 = vmatpush2.msra.mxu0 0.0
  %737 = vmatprep.subr.mxu0 0.0
  %738 = vmatpush2.msra.mxu0 0.0
  %739 = vmatprep.subr.mxu0 0.0
  %740 = vmatpush2.msra.mxu0 0.0
  %741 = vmatprep.mubr.f32.mxu0 0.0
  %742 = vmatmul.mubr.f32.gmra.mxu0 %v675
  %v743 = vpop.f32.mrf.mxu0
  %v744 = vadd.f32 0.0, %v743
  %v745 = vpop.f32.mrf.mxu0
  %746 = vdwg.mxu0
  %v747 = vadd.f32 %v130, %v744
  %v748 = vtanh.pop %v747
  %v749 = vmul.f32 %v748, 0.5
  %v750 = vadd.f32 %v749, 0.5
  %v751 = vmul.f32 %v750, %v658
  %753 = vrot.lane.b32.xlu0 %v748, 112
  %v754 = vpop.permute.xlu0 %753
  %v756 = vmul.f32 %v750, %v754
  %758 = vrot.lane.b32.xlu0 %v756, 8
  %v759 = vpop.permute.xlu0 %758
  %v761 = vadd.f32 %v751, %v759
  %v762 = vtanh.pop %v761
  %764 = vrot.lane.b32.xlu0 %v762, 16
  %v765 = vpop.permute.xlu0 %764
  %v767 = vmul.f32 %v750, %v765
  %769 = vrot.lane.b32.xlu0 %v767, 104
  %v770 = vpop.permute.xlu0 %769
  %772 = vrot.lane.b32.xlu0 %v767, 112
  %v773 = vpop.permute.xlu0 %772
  %v775 = vsel %vm259, %v770, %v773
  %v776 = vmul.f32 %v775, %v156
  %v778 = vsel %vm157, %v776, 0
  %780 = vmatprep.subr.mxu0 0.0
  %781 = vmatpush1.msra.mxu0 0.0
  %782 = vmatprep.subr.mxu0 0.0
  %783 = vmatpush1.msra.mxu0 0.0
  %784 = vmatprep.subr.mxu0 0.0
  %785 = vmatpush1.msra.mxu0 0.0
  %786 = vmatprep.subr.mxu0 0.0
  %787 = vmatpush1.msra.mxu0 0.0
  %788 = vmatprep.subr.mxu0 0.0
  %789 = vmatpush1.msra.mxu0 0.0
  %790 = vmatprep.subr.mxu0 0.0
  %791 = vmatpush1.msra.mxu0 0.0
  %792 = vmatprep.subr.mxu0 0.0
  %793 = vmatpush1.msra.mxu0 0.0
  %794 = vmatprep.subr.mxu0 0.0
  %795 = vmatpush1.msra.mxu0 0.0
  %796 = vmatprep.subr.mxu0 0.0
  %797 = vmatpush1.msra.mxu0 0.0
  %798 = vmatprep.subr.mxu0 0.0
  %799 = vmatpush1.msra.mxu0 0.0
  %800 = vmatprep.subr.mxu0 0.0
  %801 = vmatpush1.msra.mxu0 0.0
  %802 = vmatprep.subr.mxu0 0.0
  %803 = vmatpush1.msra.mxu0 0.0
  %804 = vmatprep.subr.mxu0 0.0
  %805 = vmatpush1.msra.mxu0 0.0
  %806 = vmatprep.subr.mxu0 0.0
  %807 = vmatpush1.msra.mxu0 0.0
  %808 = vmatprep.subr.mxu0 0.0
  %809 = vmatpush1.msra.mxu0 %v28
  %810 = vmatprep.subr.mxu0 0.0
  %811 = vmatpush1.msra.mxu0 %v27
  %812 = vmatprep.subr.mxu0 0.0
  %813 = vmatpush2.msra.mxu0 0.0
  %814 = vmatprep.subr.mxu0 0.0
  %815 = vmatpush2.msra.mxu0 0.0
  %816 = vmatprep.subr.mxu0 0.0
  %817 = vmatpush2.msra.mxu0 0.0
  %818 = vmatprep.subr.mxu0 0.0
  %819 = vmatpush2.msra.mxu0 0.0
  %820 = vmatprep.subr.mxu0 0.0
  %821 = vmatpush2.msra.mxu0 0.0
  %822 = vmatprep.subr.mxu0 0.0
  %823 = vmatpush2.msra.mxu0 0.0
  %824 = vmatprep.subr.mxu0 0.0
  %825 = vmatpush2.msra.mxu0 0.0
  %826 = vmatprep.subr.mxu0 0.0
  %827 = vmatpush2.msra.mxu0 0.0
  %828 = vmatprep.subr.mxu0 0.0
  %829 = vmatpush2.msra.mxu0 0.0
  %830 = vmatprep.subr.mxu0 0.0
  %831 = vmatpush2.msra.mxu0 0.0
  %832 = vmatprep.subr.mxu0 0.0
  %833 = vmatpush2.msra.mxu0 0.0
  %834 = vmatprep.subr.mxu0 0.0
  %835 = vmatpush2.msra.mxu0 0.0
  %836 = vmatprep.subr.mxu0 0.0
  %837 = vmatpush2.msra.mxu0 0.0
  %838 = vmatprep.subr.mxu0 0.0
  %839 = vmatpush2.msra.mxu0 0.0
  %840 = vmatprep.subr.mxu0 0.0
  %841 = vmatpush2.msra.mxu0 0.0
  %842 = vmatprep.subr.mxu0 0.0
  %843 = vmatpush2.msra.mxu0 0.0
  %844 = vmatprep.mubr.f32.mxu0 0.0
  %845 = vmatmul.mubr.f32.gmra.mxu0 %v778
  %v846 = vpop.f32.mrf.mxu0
  %v847 = vadd.f32 0.0, %v846
  %v848 = vpop.f32.mrf.mxu0
  %849 = vdwg.mxu0
  %v850 = vadd.f32 %v135, %v847
  %v851 = vtanh.pop %v850
  %v852 = vmul.f32 %v851, 0.5
  %v853 = vadd.f32 %v852, 0.5
  %v854 = vmul.f32 %v853, %v761
  %856 = vrot.lane.b32.xlu0 %v851, 112
  %v857 = vpop.permute.xlu0 %856
  %v859 = vmul.f32 %v853, %v857
  %861 = vrot.lane.b32.xlu0 %v859, 8
  %v862 = vpop.permute.xlu0 %861
  %v864 = vadd.f32 %v854, %v862
  %v865 = vtanh.pop %v864
  %867 = vrot.lane.b32.xlu0 %v865, 16
  %v868 = vpop.permute.xlu0 %867
  %v870 = vmul.f32 %v853, %v868
  %872 = vrot.lane.b32.xlu0 %v870, 104
  %v873 = vpop.permute.xlu0 %872
  %875 = vrot.lane.b32.xlu0 %v870, 112
  %v876 = vpop.permute.xlu0 %875
  %v878 = vsel %vm259, %v873, %v876
  %v879 = vmul.f32 %v878, %v156
  %v881 = vsel %vm157, %v879, 0
  %883 = vmatprep.subr.mxu0 0.0
  %884 = vmatpush1.msra.mxu0 0.0
  %885 = vmatprep.subr.mxu0 0.0
  %886 = vmatpush1.msra.mxu0 0.0
  %887 = vmatprep.subr.mxu0 0.0
  %888 = vmatpush1.msra.mxu0 0.0
  %889 = vmatprep.subr.mxu0 0.0
  %890 = vmatpush1.msra.mxu0 0.0
  %891 = vmatprep.subr.mxu0 0.0
  %892 = vmatpush1.msra.mxu0 0.0
  %893 = vmatprep.subr.mxu0 0.0
  %894 = vmatpush1.msra.mxu0 0.0
  %895 = vmatprep.subr.mxu0 0.0
  %896 = vmatpush1.msra.mxu0 0.0
  %897 = vmatprep.subr.mxu0 0.0
  %898 = vmatpush1.msra.mxu0 0.0
  %899 = vmatprep.subr.mxu0 0.0
  %900 = vmatpush1.msra.mxu0 0.0
  %901 = vmatprep.subr.mxu0 0.0
  %902 = vmatpush1.msra.mxu0 0.0
  %903 = vmatprep.subr.mxu0 0.0
  %904 = vmatpush1.msra.mxu0 0.0
  %905 = vmatprep.subr.mxu0 0.0
  %906 = vmatpush1.msra.mxu0 0.0
  %907 = vmatprep.subr.mxu0 0.0
  %908 = vmatpush1.msra.mxu0 0.0
  %909 = vmatprep.subr.mxu0 0.0
  %910 = vmatpush1.msra.mxu0 0.0
  %911 = vmatprep.subr.mxu0 0.0
  %912 = vmatpush1.msra.mxu0 %v28
  %913 = vmatprep.subr.mxu0 0.0
  %914 = vmatpush1.msra.mxu0 %v27
  %915 = vmatprep.subr.mxu0 0.0
  %916 = vmatpush2.msra.mxu0 0.0
  %917 = vmatprep.subr.mxu0 0.0
  %918 = vmatpush2.msra.mxu0 0.0
  %919 = vmatprep.subr.mxu0 0.0
  %920 = vmatpush2.msra.mxu0 0.0
  %921 = vmatprep.subr.mxu0 0.0
  %922 = vmatpush2.msra.mxu0 0.0
  %923 = vmatprep.subr.mxu0 0.0
  %924 = vmatpush2.msra.mxu0 0.0
  %925 = vmatprep.subr.mxu0 0.0
  %926 = vmatpush2.msra.mxu0 0.0
  %927 = vmatprep.subr.mxu0 0.0
  %928 = vmatpush2.msra.mxu0 0.0
  %929 = vmatprep.subr.mxu0 0.0
  %930 = vmatpush2.msra.mxu0 0.0
  %931 = vmatprep.subr.mxu0 0.0
  %932 = vmatpush2.msra.mxu0 0.0
  %933 = vmatprep.subr.mxu0 0.0
  %934 = vmatpush2.msra.mxu0 0.0
  %935 = vmatprep.subr.mxu0 0.0
  %936 = vmatpush2.msra.mxu0 0.0
  %937 = vmatprep.subr.mxu0 0.0
  %938 = vmatpush2.msra.mxu0 0.0
  %939 = vmatprep.subr.mxu0 0.0
  %940 = vmatpush2.msra.mxu0 0.0
  %941 = vmatprep.subr.mxu0 0.0
  %942 = vmatpush2.msra.mxu0 0.0
  %943 = vmatprep.subr.mxu0 0.0
  %944 = vmatpush2.msra.mxu0 0.0
  %945 = vmatprep.subr.mxu0 0.0
  %946 = vmatpush2.msra.mxu0 0.0
  %947 = vmatprep.mubr.f32.mxu0 0.0
  %948 = vmatmul.mubr.f32.gmra.mxu0 %v881
  %v949 = vpop.f32.mrf.mxu0
  %v950 = vadd.f32 0.0, %v949
  %v951 = vpop.f32.mrf.mxu0
  %952 = vdwg.mxu0
  %v953 = vadd.f32 %v140, %v950
  %v954 = vtanh.pop %v953
  %v955 = vmul.f32 %v954, 0.5
  %v956 = vadd.f32 %v955, 0.5
  %v957 = vmul.f32 %v956, %v864
  %959 = vrot.lane.b32.xlu0 %v954, 112
  %v960 = vpop.permute.xlu0 %959
  %v962 = vmul.f32 %v956, %v960
  %964 = vrot.lane.b32.xlu0 %v962, 8
  %v965 = vpop.permute.xlu0 %964
  %v967 = vadd.f32 %v957, %v965
  %v968 = vtanh.pop %v967
  %970 = vrot.lane.b32.xlu0 %v968, 16
  %v971 = vpop.permute.xlu0 %970
  %v973 = vmul.f32 %v956, %v971
  %975 = vrot.lane.b32.xlu0 %v29, 24
  %v976 = vpop.permute.xlu0 %975
  %v978 = vmul.f32 %v973, %v976
  %980 = vrot.lane.b32.xlu0 %v978, 104
  %v981 = vpop.permute.xlu0 %980
  %v983 = vsel %vm259, %v981, 0.0
  %984 = vadd.xlane.f32.xlu0 %v983
  %v985 = vpop.xlane.xlu0 %984
  %v987 = vrot.slane %v985, 2
  %v989 = vadd.f32 %v985, %v987
  %v990 = vrot.slane %v985, 4
  %v992 = vadd.f32 %v989, %v990
  %993 = vrot.lane.b32.xlu0 %v29, 120
  %v994 = vpop.permute.xlu0 %993
  %v996 = vadd.f32 %v992, %v994
  %vm997 = vcmask 1024
  %998 = vst.msk [vmem:[%s2] sm:$0x3] %vm997, %v996
  // Predicated region
  $region10: #{machine_forward_impl.1} parent=0 // pred_check
    _
  $region11: #{machine_forward_impl.1} parent=0 // pred_check_branch
    %1000 = sbr.rel (0) target = $region13
  $region12: #{machine_forward_impl.1} parent=0 // pred_region
    _
  $region13: #{machine_forward_impl.1} parent=0 // pred_fallthru
    _
  // Predicated region
  $region14: #{machine_forward_impl.1} parent=0 // pred_check
    _
  $region15: #{machine_forward_impl.1} parent=0 // pred_check_branch
    %1002 = sbr.rel (0) target = $region17
  $region16: #{machine_forward_impl.1} parent=0 // pred_region
    _
  $region17: #{machine_forward_impl.1} parent=0 // pred_fallthru
    _

</llo_original>
